<compile_context>
chip_gen: v5e
topology: v5e:2x2
jax: 0.10.0
libtpu: 0.0.40
codegen_flags: <defaults>
</compile_context>

<pallas_src>
import jax
import jax.numpy as jnp
from jax import lax
from jax.experimental import pallas as pl
from jax.experimental.pallas import tpu as pltpu


def _round_up(x, m):
    return (x + m - 1) // m * m


# ----------------------------------------------------------------------------
# Pallas kernel: deep MLP (3 x Linear+ReLU) + fused output head + Sigmoid.
#     sigmoid([wide, d] @ Wo + bo) == sigmoid(wo_w . wide + wo_d . d + bo)
# ----------------------------------------------------------------------------
def wide_deep_kernel(deep_ref, wide_ref,
                     w1_ref, b1_ref,
                     w2_ref, b2_ref,
                     w3_ref, b3_ref,
                     wo_d_ref, wo_w_ref, bo_ref,
                     out_ref):
    f32 = jnp.float32
    # Deep tower: bf16 MXU operands, f32 accumulation, f32 elementwise
    # (v5e VPU/EUP have no bf16).
    h = jnp.dot(deep_ref[...], w1_ref[...], preferred_element_type=f32)
    h = jnp.maximum(h + b1_ref[...], 0.0)
    h = jnp.dot(h.astype(w2_ref.dtype), w2_ref[...], preferred_element_type=f32)
    h = jnp.maximum(h + b2_ref[...], 0.0)
    h = jnp.dot(h.astype(w3_ref.dtype), w3_ref[...], preferred_element_type=f32)
    h = jnp.maximum(h + b3_ref[...], 0.0)                       # (tile_b, h3) f32

    # Output head, computed directly as a lane-dense (1, tile_b) row:
    #   logit[j] = wo_d . h[j] + wo_w . wide[j] + bo
    # dot_general contracting the last dims of both operands ("trans_b") gives
    # the row layout without an N=1 matmul or a column->row relayout, so the
    # store below is an unmasked, lane-dense block write.
    dims = (((1,), (1,)), ((), ()))
    deep_row = lax.dot_general(wo_d_ref[...], h, dims,
                               preferred_element_type=f32)       # (1, tile_b)
    wide_row = lax.dot_general(wo_w_ref[...], wide_ref[...].astype(f32), dims,
                               preferred_element_type=f32)       # (1, tile_b)
    logit = deep_row + wide_row + bo_ref[...]
    out_ref[...] = jax.nn.sigmoid(logit)[None]                   # (1, 1, tile_b)


# ----------------------------------------------------------------------------
# Parameter packing: cast MXU operands to bf16, keep biases / head weights f32,
# reshape the (K, 1) output-weight columns to (1, K) row vectors.
# ----------------------------------------------------------------------------
def pack_params(params, compute_dtype=jnp.bfloat16):
    return {
        "w1": params["w1"].astype(compute_dtype),
        "b1": params["b1"].reshape(1, -1).astype(jnp.float32),
        "w2": params["w2"].astype(compute_dtype),
        "b2": params["b2"].reshape(1, -1).astype(jnp.float32),
        "w3": params["w3"].astype(compute_dtype),
        "b3": params["b3"].reshape(1, -1).astype(jnp.float32),
        "wo_d": params["wo_deep"].reshape(1, -1).astype(jnp.float32),
        "wo_w": params["wo_wide"].reshape(1, -1).astype(jnp.float32),
        "bo": params["bo"].reshape(1, 1).astype(jnp.float32),
    }


def _choose_tile_b(batch, block_b):
    """Largest batch tile (multiple of 8, <= block_b) that still leaves a
    >=2-step grid whenever the batch allows it (v7x megacore sharding of the
    parallel batch axis)."""
    if batch <= 8:
        return 8
    half = _round_up(pl.cdiv(batch, 2), 8)
    return max(8, min(block_b, half))


def wide_deep_forward(deep_in, wide_in, packed, *, block_b=8192):
    """deep_in: [B, deep_dim], wide_in: [B, wide_dim] -> [B, 1] f32 probs."""
    B, deep_dim = deep_in.shape
    wide_dim = wide_in.shape[1]
    cdt = packed["w1"].dtype

    # No wrapper-side pad-and-copy: activations go straight into the kernel.
    # (Feature dims 25/9 are legal because block last dim == full array extent;
    #  the ragged batch is handled by a cdiv grid with a partial last block
    #  whose garbage rows are sliced off below.)
    deep_in = deep_in.astype(cdt)     # no-op when already bf16
    wide_in = wide_in.astype(cdt)     # bf16 wide halves its HBM traffic

    tile_b = _choose_tile_b(B, block_b)
    num_tiles = pl.cdiv(B, tile_b)

    def act_spec(cols):
        return pl.BlockSpec((tile_b, cols), lambda i: (i, 0))

    def resident(arr):
        return pl.BlockSpec(arr.shape, lambda i: (0, 0))

    out = pl.pallas_call(
        wide_deep_kernel,
        out_shape=jax.ShapeDtypeStruct((num_tiles, 1, tile_b), jnp.float32),
        grid=(num_tiles,),
        in_specs=[
            act_spec(deep_dim),          # deep activations (tiled over batch)
            act_spec(wide_dim),          # wide activations (tiled over batch)
            resident(packed["w1"]), resident(packed["b1"]),
            resident(packed["w2"]), resident(packed["b2"]),
            resident(packed["w3"]), resident(packed["b3"]),
            resident(packed["wo_d"]),    # wo_deep as a row vector
            resident(packed["wo_w"]),    # wo_wide as a row vector
            resident(packed["bo"]),      # bo
        ],
        out_specs=pl.BlockSpec((1, 1, tile_b), lambda i: (i, 0, 0)),
        compiler_params=pltpu.CompilerParams(
            dimension_semantics=("parallel",),
            vmem_limit_bytes=64 * 1024 * 1024),
    )(deep_in, wide_in,
      packed["w1"], packed["b1"],
      packed["w2"], packed["b2"],
      packed["w3"], packed["b3"],
      packed["wo_d"], packed["wo_w"], packed["bo"])

    # Tile i holds rows [i*tile_b, (i+1)*tile_b); flatten, drop padded rows.
    return out.reshape(num_tiles * tile_b)[:B].reshape(B, 1)


# ----------------------------------------------------------------------------
# Plain-JAX glue: embedding gathers + per-feature concatenation.
# The activation is materialized once, directly in the kernel's compute dtype.
# ----------------------------------------------------------------------------
def build_tower_input(features, confs, embeddings, batch, dtype=jnp.bfloat16):
    parts = []
    for feat in features:
        conf = confs.get(feat, None)
        if conf is not None and conf["type"] == "categorical":
            parts.append(jnp.take(embeddings[feat], batch[feat], axis=0).astype(dtype))
        elif conf is not None and conf["type"] == "multi_categorical":
            emb = jnp.take(embeddings[feat], batch[feat], axis=0)   # [B, L, D]
            parts.append(jnp.sum(emb, axis=1).astype(dtype))
        else:
            parts.append(batch[feat].astype(dtype))                 # [B, 1]
    return jnp.concatenate(parts, axis=1)


def feature_dim(conf):
    if conf is not None and conf["type"] in ("categorical", "multi_categorical"):
        return conf["embedding_dim"]
    return 1


if __name__ == "__main__":
    key = jax.random.PRNGKey(0)
    keys = iter(jax.random.split(key, 64))

    def nxt():
        return next(keys)

    # Feature configuration (mirrors WideDeep.__init__ arguments).
    deep_features = ["age", "item_id", "tags"]
    wide_features = ["price", "cat_id"]
    deep_features_conf = {
        "age":     {"type": "continuous"},
        "item_id": {"type": "categorical", "num_categories": 100, "embedding_dim": 16},
        "tags":    {"type": "multi_categorical", "num_categories": 20, "embedding_dim": 8},
    }
    wide_features_conf = {
        "price":  {"type": "continuous"},
        "cat_id": {"type": "categorical", "num_categories": 50, "embedding_dim": 8},
    }
    deep_structure = [128, 64, 32]

    deep_dim = sum(feature_dim(deep_features_conf.get(f)) for f in deep_features)  # 25
    wide_dim = sum(feature_dim(wide_features_conf.get(f)) for f in wide_features)  # 9

    def table(rows, cols):
        return jax.random.normal(nxt(), (rows, cols), jnp.float32) * 0.05

    deep_embeddings = {
        "item_id": table(100, 16),
        "tags":    table(20 + 1, 8),
    }
    wide_embeddings = {
        "cat_id": table(50, 8),
    }

    def linear(in_f, out_f):
        w = jax.random.normal(nxt(), (in_f, out_f), jnp.float32) * (1.0 / jnp.sqrt(in_f))
        b = jax.random.normal(nxt(), (1, out_f), jnp.float32) * 0.01
        return w, b

    w1, b1 = linear(deep_dim, deep_structure[0])
    w2, b2 = linear(deep_structure[0], deep_structure[1])
    w3, b3 = linear(deep_structure[1], deep_structure[2])
    # out_layer: Linear(wide_dim + deep_structure[-1] -> 1), split wide/deep.
    wo, bo = linear(wide_dim + deep_structure[-1], 1)
    params = {
        "w1": w1, "b1": b1, "w2": w2, "b2": b2, "w3": w3, "b3": b3,
        "wo_wide": wo[:wide_dim, :], "wo_deep": wo[wide_dim:, :], "bo": bo,
    }
    packed = pack_params(params)

    # Pure-JAX f32 reference of the same math.
    def ref(d, w, p):
        h = jnp.maximum(d @ p["w1"] + p["b1"], 0.0)
        h = jnp.maximum(h @ p["w2"] + p["b2"], 0.0)
        h = jnp.maximum(h @ p["w3"] + p["b3"], 0.0)
        x = jnp.concatenate([w, h], axis=1)
        full_wo = jnp.concatenate([p["wo_wide"], p["wo_deep"]], axis=0)
        return jax.nn.sigmoid(x @ full_wo + p["bo"])

    def make_batch(B):
        return {
            "age":     jax.random.uniform(nxt(), (B, 1), jnp.float32, 18.0, 65.0),
            "item_id": jax.random.randint(nxt(), (B,), 0, 100, jnp.int32),
            "tags":    jax.random.randint(nxt(), (B, 3), 0, 21, jnp.int32),
            "price":   jax.random.uniform(nxt(), (B, 1), jnp.float32, 0.0, 10.0),
            "cat_id":  jax.random.randint(nxt(), (B,), 0, 50, jnp.int32),
        }

    def run_and_check(B):
        batch = make_batch(B)
        # Kernel inputs: bf16, materialized exactly once.
        deep_in = build_tower_input(deep_features, deep_features_conf,
                                    deep_embeddings, batch, dtype=jnp.bfloat16)
        wide_in = build_tower_input(wide_features, wide_features_conf,
                                    wide_embeddings, batch, dtype=jnp.bfloat16)
        # f32 inputs for the pure-JAX reference.
        deep_f32 = build_tower_input(deep_features, deep_features_conf,
                                     deep_embeddings, batch, dtype=jnp.float32)
        wide_f32 = build_tower_input(wide_features, wide_features_conf,
                                     wide_embeddings, batch, dtype=jnp.float32)
        assert deep_in.shape == (B, deep_dim) and wide_in.shape == (B, wide_dim)
        out = jax.block_until_ready(wide_deep_forward(deep_in, wide_in, packed))
        expected = ref(deep_f32, wide_f32, params)
        assert out.shape == (B, 1)
        # bf16 MXU operands / bf16 inputs (f32 accumulate) -> loosened tolerance.
        assert jnp.allclose(out, expected, atol=5e-2, rtol=1e-2), (
            float(jnp.max(jnp.abs(out - expected))))

    # Small primary check (single grid step, block == full array on all axes).
    run_and_check(8)
    # Batch-grid check: B=600 -> tile_b=304, grid=(2,) (2 parallel steps,
    # partial last block), no batch padding copies.
    run_and_check(600)

    print("KERNEL_OK")
</pallas_src>

<mosaic_0001>
module attributes {stable_mosaic.version = 11 : i64} {
  func.func @wide_deep_kernel(%arg0: i32, %arg1: memref<8x25xbf16, #tpu.memory_space<vmem>>, %arg2: memref<8x9xbf16, #tpu.memory_space<vmem>>, %arg3: memref<25x128xbf16, #tpu.memory_space<vmem>>, %arg4: memref<1x128xf32, #tpu.memory_space<vmem>>, %arg5: memref<128x64xbf16, #tpu.memory_space<vmem>>, %arg6: memref<1x64xf32, #tpu.memory_space<vmem>>, %arg7: memref<64x32xbf16, #tpu.memory_space<vmem>>, %arg8: memref<1x32xf32, #tpu.memory_space<vmem>>, %arg9: memref<1x32xf32, #tpu.memory_space<vmem>>, %arg10: memref<1x9xf32, #tpu.memory_space<vmem>>, %arg11: memref<1x1xf32, #tpu.memory_space<vmem>>, %arg12: memref<1x1x8xf32, #tpu.memory_space<vmem>>) attributes {dimension_semantics = [#tpu.dimension_semantics<parallel>], iteration_bounds = array<i64: 1>, scalar_prefetch = 0 : i64, scratch_operands = 0 : i64, tpu.core_type = #tpu.core_type<tc>, window_params = [{transform_indices = @transform_0, window_bounds = array<i64: 8, 25>}, {transform_indices = @transform_1, window_bounds = array<i64: 8, 9>}, {pipeline_mode = #tpu.pipeline_mode<synchronous>, transform_indices = @transform_2, window_bounds = array<i64: 25, 128>}, {pipeline_mode = #tpu.pipeline_mode<synchronous>, transform_indices = @transform_3, window_bounds = array<i64: 1, 128>}, {pipeline_mode = #tpu.pipeline_mode<synchronous>, transform_indices = @transform_4, window_bounds = array<i64: 128, 64>}, {pipeline_mode = #tpu.pipeline_mode<synchronous>, transform_indices = @transform_5, window_bounds = array<i64: 1, 64>}, {pipeline_mode = #tpu.pipeline_mode<synchronous>, transform_indices = @transform_6, window_bounds = array<i64: 64, 32>}, {pipeline_mode = #tpu.pipeline_mode<synchronous>, transform_indices = @transform_7, window_bounds = array<i64: 1, 32>}, {pipeline_mode = #tpu.pipeline_mode<synchronous>, transform_indices = @transform_8, window_bounds = array<i64: 1, 32>}, {pipeline_mode = #tpu.pipeline_mode<synchronous>, transform_indices = @transform_9, window_bounds = array<i64: 1, 9>}, {pipeline_mode = #tpu.pipeline_mode<synchronous>, transform_indices = @transform_10, window_bounds = array<i64: 1, 1>}, {transform_indices = @transform_11, window_bounds = array<i64: 1, 1, 8>}]} {
    %c0 = arith.constant 0 : index
    %c0_0 = arith.constant 0 : index
    %0 = vector.load %arg1[%c0, %c0_0] : memref<8x25xbf16, #tpu.memory_space<vmem>>, vector<8x25xbf16>
    %c0_1 = arith.constant 0 : index
    %c0_2 = arith.constant 0 : index
    %1 = vector.load %arg3[%c0_1, %c0_2] : memref<25x128xbf16, #tpu.memory_space<vmem>>, vector<25x128xbf16>
    %cst = arith.constant dense<0.000000e+00> : vector<8x128xf32>
    %2 = tpu.matmul %0, %1, %cst {dimension_numbers = #tpu.dot_dimension_numbers<[1], [0], [0], [1], [0, 0, 1, 1], [], []>} : vector<8x25xbf16>, vector<25x128xbf16>, vector<8x128xf32> -> vector<8x128xf32>
    %c0_3 = arith.constant 0 : index
    %c0_4 = arith.constant 0 : index
    %3 = vector.load %arg4[%c0_3, %c0_4] : memref<1x128xf32, #tpu.memory_space<vmem>>, vector<1x128xf32>
    %4 = vector.broadcast %3 : vector<1x128xf32> to vector<8x128xf32>
    %5 = arith.addf %2, %4 : vector<8x128xf32>
    %cst_5 = arith.constant 0.000000e+00 : f32
    %6 = vector.broadcast %cst_5 : f32 to vector<8x128xf32>
    %7 = arith.maximumf %5, %6 : vector<8x128xf32>
    %8 = arith.truncf %7 : vector<8x128xf32> to vector<8x128xbf16>
    %c0_6 = arith.constant 0 : index
    %c0_7 = arith.constant 0 : index
    %9 = vector.load %arg5[%c0_6, %c0_7] : memref<128x64xbf16, #tpu.memory_space<vmem>>, vector<128x64xbf16>
    %cst_8 = arith.constant dense<0.000000e+00> : vector<8x64xf32>
    %10 = tpu.matmul %8, %9, %cst_8 {dimension_numbers = #tpu.dot_dimension_numbers<[1], [0], [0], [1], [0, 0, 1, 1], [], []>} : vector<8x128xbf16>, vector<128x64xbf16>, vector<8x64xf32> -> vector<8x64xf32>
    %c0_9 = arith.constant 0 : index
    %c0_10 = arith.constant 0 : index
    %11 = vector.load %arg6[%c0_9, %c0_10] : memref<1x64xf32, #tpu.memory_space<vmem>>, vector<1x64xf32>
    %12 = vector.broadcast %11 : vector<1x64xf32> to vector<8x64xf32>
    %13 = arith.addf %10, %12 : vector<8x64xf32>
    %cst_11 = arith.constant 0.000000e+00 : f32
    %14 = vector.broadcast %cst_11 : f32 to vector<8x64xf32>
    %15 = arith.maximumf %13, %14 : vector<8x64xf32>
    %16 = arith.truncf %15 : vector<8x64xf32> to vector<8x64xbf16>
    %c0_12 = arith.constant 0 : index
    %c0_13 = arith.constant 0 : index
    %17 = vector.load %arg7[%c0_12, %c0_13] : memref<64x32xbf16, #tpu.memory_space<vmem>>, vector<64x32xbf16>
    %cst_14 = arith.constant dense<0.000000e+00> : vector<8x32xf32>
    %18 = tpu.matmul %16, %17, %cst_14 {dimension_numbers = #tpu.dot_dimension_numbers<[1], [0], [0], [1], [0, 0, 1, 1], [], []>} : vector<8x64xbf16>, vector<64x32xbf16>, vector<8x32xf32> -> vector<8x32xf32>
    %c0_15 = arith.constant 0 : index
    %c0_16 = arith.constant 0 : index
    %19 = vector.load %arg8[%c0_15, %c0_16] : memref<1x32xf32, #tpu.memory_space<vmem>>, vector<1x32xf32>
    %20 = vector.broadcast %19 : vector<1x32xf32> to vector<8x32xf32>
    %21 = arith.addf %18, %20 : vector<8x32xf32>
    %cst_17 = arith.constant 0.000000e+00 : f32
    %22 = vector.broadcast %cst_17 : f32 to vector<8x32xf32>
    %23 = arith.maximumf %21, %22 : vector<8x32xf32>
    %c0_18 = arith.constant 0 : index
    %c0_19 = arith.constant 0 : index
    %24 = vector.load %arg9[%c0_18, %c0_19] : memref<1x32xf32, #tpu.memory_space<vmem>>, vector<1x32xf32>
    %cst_20 = arith.constant dense<0.000000e+00> : vector<1x8xf32>
    %25 = tpu.matmul %24, %23, %cst_20 {dimension_numbers = #tpu.dot_dimension_numbers<[1], [1], [0], [0], [0, 0, 1, 0], [], []>} : vector<1x32xf32>, vector<8x32xf32>, vector<1x8xf32> -> vector<1x8xf32>
    %c0_21 = arith.constant 0 : index
    %c0_22 = arith.constant 0 : index
    %26 = vector.load %arg10[%c0_21, %c0_22] : memref<1x9xf32, #tpu.memory_space<vmem>>, vector<1x9xf32>
    %c0_23 = arith.constant 0 : index
    %c0_24 = arith.constant 0 : index
    %27 = vector.load %arg2[%c0_23, %c0_24] : memref<8x9xbf16, #tpu.memory_space<vmem>>, vector<8x9xbf16>
    %28 = arith.extf %27 : vector<8x9xbf16> to vector<8x9xf32>
    %cst_25 = arith.constant dense<0.000000e+00> : vector<1x8xf32>
    %29 = tpu.matmul %26, %28, %cst_25 {dimension_numbers = #tpu.dot_dimension_numbers<[1], [1], [0], [0], [0, 0, 1, 0], [], []>} : vector<1x9xf32>, vector<8x9xf32>, vector<1x8xf32> -> vector<1x8xf32>
    %30 = arith.addf %25, %29 : vector<1x8xf32>
    %c0_26 = arith.constant 0 : index
    %c0_27 = arith.constant 0 : index
    %31 = vector.load %arg11[%c0_26, %c0_27] : memref<1x1xf32, #tpu.memory_space<vmem>>, vector<1x1xf32>
    %32 = vector.broadcast %31 : vector<1x1xf32> to vector<1x8xf32>
    %33 = arith.addf %30, %32 : vector<1x8xf32>
    %34 = arith.negf %33 : vector<1x8xf32>
    %35 = math.exp %34 : vector<1x8xf32>
    %cst_28 = arith.constant 1.000000e+00 : f32
    %36 = vector.broadcast %cst_28 : f32 to vector<1x8xf32>
    %37 = arith.addf %36, %35 : vector<1x8xf32>
    %38 = arith.divf %36, %37 : vector<1x8xf32>
    %39 = vector.shape_cast %38 : vector<1x8xf32> to vector<1x1x8xf32>
    %c0_29 = arith.constant 0 : index
    %c0_30 = arith.constant 0 : index
    %c0_31 = arith.constant 0 : index
    %40 = vector.load %arg12[%c0_29, %c0_30, %c0_31] : memref<1x1x8xf32, #tpu.memory_space<vmem>>, vector<1x1x8xf32>
    tpu.vector_store %arg12[%c0_29, %c0_30, %c0_31], %39 {strides = array<i32>} : memref<1x1x8xf32, #tpu.memory_space<vmem>>, vector<1x1x8xf32>,
    return
  }
  func.func @transform_0(%arg0: i32) -> (i32, i32) {
    %c0_i32 = arith.constant 0 : i32
    %c0_i32_0 = arith.constant 0 : i32
    return %arg0, %c0_i32 : i32, i32
  }
  func.func @transform_1(%arg0: i32) -> (i32, i32) {
    %c0_i32 = arith.constant 0 : i32
    %c0_i32_0 = arith.constant 0 : i32
    return %arg0, %c0_i32 : i32, i32
  }
  func.func @transform_2(%arg0: i32) -> (i32, i32) {
    %c0_i32 = arith.constant 0 : i32
    %c0_i32_0 = arith.constant 0 : i32
    %c0_i32_1 = arith.constant 0 : i32
    return %c0_i32, %c0_i32_0 : i32, i32
  }
  func.func @transform_3(%arg0: i32) -> (i32, i32) {
    %c0_i32 = arith.constant 0 : i32
    %c0_i32_0 = arith.constant 0 : i32
    %c0_i32_1 = arith.constant 0 : i32
    return %c0_i32, %c0_i32_0 : i32, i32
  }
  func.func @transform_4(%arg0: i32) -> (i32, i32) {
    %c0_i32 = arith.constant 0 : i32
    %c0_i32_0 = arith.constant 0 : i32
    %c0_i32_1 = arith.constant 0 : i32
    return %c0_i32, %c0_i32_0 : i32, i32
  }
  func.func @transform_5(%arg0: i32) -> (i32, i32) {
    %c0_i32 = arith.constant 0 : i32
    %c0_i32_0 = arith.constant 0 : i32
    %c0_i32_1 = arith.constant 0 : i32
    return %c0_i32, %c0_i32_0 : i32, i32
  }
  func.func @transform_6(%arg0: i32) -> (i32, i32) {
    %c0_i32 = arith.constant 0 : i32
    %c0_i32_0 = arith.constant 0 : i32
    %c0_i32_1 = arith.constant 0 : i32
    return %c0_i32, %c0_i32_0 : i32, i32
  }
  func.func @transform_7(%arg0: i32) -> (i32, i32) {
    %c0_i32 = arith.constant 0 : i32
    %c0_i32_0 = arith.constant 0 : i32
    %c0_i32_1 = arith.constant 0 : i32
    return %c0_i32, %c0_i32_0 : i32, i32
  }
  func.func @transform_8(%arg0: i32) -> (i32, i32) {
    %c0_i32 = arith.constant 0 : i32
    %c0_i32_0 = arith.constant 0 : i32
    %c0_i32_1 = arith.constant 0 : i32
    return %c0_i32, %c0_i32_0 : i32, i32
  }
  func.func @transform_9(%arg0: i32) -> (i32, i32) {
    %c0_i32 = arith.constant 0 : i32
    %c0_i32_0 = arith.constant 0 : i32
    %c0_i32_1 = arith.constant 0 : i32
    return %c0_i32, %c0_i32_0 : i32, i32
  }
  func.func @transform_10(%arg0: i32) -> (i32, i32) {
    %c0_i32 = arith.constant 0 : i32
    %c0_i32_0 = arith.constant 0 : i32
    %c0_i32_1 = arith.constant 0 : i32
    return %c0_i32, %c0_i32_0 : i32, i32
  }
  func.func @transform_11(%arg0: i32) -> (i32, i32, i32) {
    %c0_i32 = arith.constant 0 : i32
    %c0_i32_0 = arith.constant 0 : i32
    %c0_i32_1 = arith.constant 0 : i32
    return %arg0, %c0_i32, %c0_i32_0 : i32, i32, i32
  }
}

</mosaic_0001>

<llo_original>
// kernel: tpu_custom_call.1
$region0: #{tpu_custom_call.1}
  #allocation0 [shape = 'u32[]', space=smem, size = 0x4, offset = 0x4, fixed_abs, tag = 'smem constant byte address 0x4 - core index']
  #allocation1 [shape = 'u32[72,128]{1,0:T(1,128)}', space=vmem, size = 0x9000, scoped, tag = 'internal scratch']
  #allocation2 [shape = 'f32[1,1]{1,0:T(1,128)S(1)}', space=vmem, size = 0x200, scoped, tag = 'scoped memory for tpu_custom_call.1']
  %s0 = inlined_call_operand.vmem [shape: bf16[8,25], index: 0, kind: input, shape index: {}]
  %s1 = inlined_call_operand.vmem [shape: bf16[8,9], index: 1, kind: input, shape index: {}]
  %s2 = inlined_call_operand.vmem [shape: bf16[25,128], index: 2, kind: input, shape index: {}]
  %s3 = inlined_call_operand.vmem [shape: f32[1,128], index: 3, kind: input, shape index: {}]
  %s4 = inlined_call_operand.vmem [shape: bf16[128,64], index: 4, kind: input, shape index: {}]
  %s5 = inlined_call_operand.vmem [shape: f32[1,64], index: 5, kind: input, shape index: {}]
  %s6 = inlined_call_operand.vmem [shape: bf16[64,32], index: 6, kind: input, shape index: {}]
  %s7 = inlined_call_operand.vmem [shape: f32[1,32], index: 7, kind: input, shape index: {}]
  %s8 = inlined_call_operand.vmem [shape: f32[1,32], index: 8, kind: input, shape index: {}]
  %s9 = inlined_call_operand.vmem [shape: f32[1,9], index: 9, kind: input, shape index: {}]
  %s10 = inlined_call_operand.<no memory space> [shape: f32[1,1], index: 10, kind: input, shape index: {}]
  %s11 = inlined_call_operand.hbm [shape: f32[1,1,8], index: 11, kind: output, shape index: {}]
  %s12 = sld [smem:[#allocation0]]
  $region54: #{tpu_custom_call.1} parent=0
    _
  %s14 = ssub.s32 1, %s12
  %s15 = scalar_select 0, %s14, %s12
  %v16 = vstv %s10
  %17 = vst [vmem:[#allocation2] sm:$0x1] %v16
  $region1: #{tpu_custom_call.1} parent=0
    #allocation3 [shape = 'u8[512]{0}', space=vmem, size = 0x400, scoped, tag = 'output window, operand 0, single buffered']
    #allocation4 [shape = 's32[1]{0}', space=sflag, size = 0x4, scoped, tag = 'scoped memory for tpu_custom_call.1']
    %18 = vsyncpa [#allocation4], 0
    // Predicated region
    $region2: #{tpu_custom_call.1} parent=1 // pred_check
      _
    $region3: #{tpu_custom_call.1} parent=1 // pred_check_branch
      %20 = sbr.rel (0) target = $region5
    $region4: #{tpu_custom_call.1} parent=1 // pred_region
      _
    $region5: #{tpu_custom_call.1} parent=1 // pred_fallthru
      _
    // Predicated region
    $region6: #{tpu_custom_call.1} parent=1 // pred_check
      _
    $region7: #{tpu_custom_call.1} parent=1 // pred_check_branch
      %22 = sbr.rel (0) target = $region9
    $region8: #{tpu_custom_call.1} parent=1 // pred_region
      _
    $region9: #{tpu_custom_call.1} parent=1 // pred_fallthru
      _
    // Predicated region
    $region10: #{tpu_custom_call.1} parent=1 // pred_check
      _
    $region11: #{tpu_custom_call.1} parent=1 // pred_check_branch
      %24 = sbr.rel (0) target = $region13
    $region12: #{tpu_custom_call.1} parent=1 // pred_region
      _
    $region13: #{tpu_custom_call.1} parent=1 // pred_fallthru
      _
    // Predicated region
    $region14: #{tpu_custom_call.1} parent=1 // pred_check
      _
    $region15: #{tpu_custom_call.1} parent=1 // pred_check_branch
      %26 = sbr.rel (0) target = $region17
    $region16: #{tpu_custom_call.1} parent=1 // pred_region
      _
    $region17: #{tpu_custom_call.1} parent=1 // pred_fallthru
      _
    // Predicated region
    $region18: #{tpu_custom_call.1} parent=1 // pred_check
      _
    $region19: #{tpu_custom_call.1} parent=1 // pred_check_branch
      %28 = sbr.rel (0) target = $region21
    $region20: #{tpu_custom_call.1} parent=1 // pred_region
      _
    $region21: #{tpu_custom_call.1} parent=1 // pred_fallthru
      _
    // Predicated region
    $region22: #{tpu_custom_call.1} parent=1 // pred_check
      _
    $region23: #{tpu_custom_call.1} parent=1 // pred_check_branch
      %30 = sbr.rel (0) target = $region25
    $region24: #{tpu_custom_call.1} parent=1 // pred_region
      _
    $region25: #{tpu_custom_call.1} parent=1 // pred_fallthru
      _
    // Predicated region
    $region26: #{tpu_custom_call.1} parent=1 // pred_check
      _
    $region27: #{tpu_custom_call.1} parent=1 // pred_check_branch
      %32 = sbr.rel (0) target = $region29
    $region28: #{tpu_custom_call.1} parent=1 // pred_region
      _
    $region29: #{tpu_custom_call.1} parent=1 // pred_fallthru
      _
    // Predicated region
    $region30: #{tpu_custom_call.1} parent=1 // pred_check
      _
    $region31: #{tpu_custom_call.1} parent=1 // pred_check_branch
      %34 = sbr.rel (0) target = $region33
    $region32: #{tpu_custom_call.1} parent=1 // pred_region
      _
    $region33: #{tpu_custom_call.1} parent=1 // pred_fallthru
      _
    // Predicated region
    $region34: #{tpu_custom_call.1} parent=1 // pred_check
      _
    $region35: #{tpu_custom_call.1} parent=1 // pred_check_branch
      %36 = sbr.rel (0) target = $region37
    $region36: #{tpu_custom_call.1} parent=1 // pred_region
      _
    $region37: #{tpu_custom_call.1} parent=1 // pred_fallthru
      _
    // Predicated region
    $region38: #{tpu_custom_call.1} parent=1 // pred_check
      _
    $region39: #{tpu_custom_call.1} parent=1 // pred_check_branch
      %38 = sbr.rel (0) target = $region41
    $region40: #{tpu_custom_call.1} parent=1 // pred_region
      _
    $region41: #{tpu_custom_call.1} parent=1 // pred_fallthru
      _
    // Predicated region
    $region42: #{tpu_custom_call.1} parent=1 // pred_check
      _
    $region43: #{tpu_custom_call.1} parent=1 // pred_check_branch
      %40 = sbr.rel (0) target = $region45
    $region44: #{tpu_custom_call.1} parent=1 // pred_region
      _
    $region45: #{tpu_custom_call.1} parent=1 // pred_fallthru
      _
    %v42 = vld [vmem:[%s0] sm:$0xf]
    %v43 = vld [vmem:[%s2] sm:$0xf]
    %v44 = vld [vmem:[%s2 + $0x4] sm:$0xf]
    %v45 = vld [vmem:[%s2 + $0x8] sm:$0xf]
    %v46 = vld [vmem:[%s2 + $0xc] sm:$0x1]
    %v47 = vld [vmem:[%s3] sm:$0x1]
    %v49 = vperm.slane %v47, 0
    %v55 = vunpack.c.l.b16 %v43
    %v56 = vunpack.c.l.b16 %v44
    %v57 = vunpack.c.l.b16 %v45
    %v58 = vunpack.c.l.b16 %v46
    %v59 = vpack.c.b16 %v56, %v55
    %v60 = vpack.c.b16 %v58, %v57
    %vm62 = vcmask 203776
    %v64 = vsel %vm62, %v42, 0
    %vm66 = vcmask 1043456
    %vm67 = vcmask 1044480
    %v68 = vsel %vm66, 4294967295, 65535
    %v69 = vsel %vm67, %v68, 0
    %v71 = vand.u32 %v60, %v69
    %73 = vmatpush.bf16.msra.mxu0 0
    %74 = vmatpush.bf16.msra.mxu0 0
    %75 = vmatpush.bf16.msra.mxu0 0
    %76 = vmatpush.bf16.msra.mxu0 0
    %77 = vmatpush.bf16.msra.mxu0 0
    %78 = vmatpush.bf16.msra.mxu0 0
    %79 = vmatpush.bf16.msra.mxu0 %v71
    %80 = vmatpush.bf16.msra.mxu0 %v59
    %81 = vmatmul.bf16.gmra.mxu0 %v64
    %v82 = vpop.f32.mrf.mxu0
    %v83 = vadd.f32 %v49, %v82
    %v84 = vpop.f32.mrf.mxu0
    %85 = vdwg.mxu0
    %v86 = vmax.f32 %v83, 0.0
    %v87 = vpack.c.bf16 %v86, %v86
    %v88 = vld [vmem:[%s4] sm:$0xf]
    %v89 = vld [vmem:[%s4 + $0x4] sm:$0xf]
    %v90 = vld [vmem:[%s4 + $0x8] sm:$0xf]
    %v91 = vld [vmem:[%s4 + $0xc] sm:$0xf]
    %v92 = vld [vmem:[%s4 + $0x10] sm:$0xf]
    %v93 = vld [vmem:[%s4 + $0x14] sm:$0xf]
    %v94 = vld [vmem:[%s4 + $0x18] sm:$0xf]
    %v95 = vld [vmem:[%s4 + $0x1c] sm:$0xf]
    %v96 = vld [vmem:[%s4 + $0x20] sm:$0xf]
    %v97 = vld [vmem:[%s4 + $0x24] sm:$0xf]
    %v98 = vld [vmem:[%s4 + $0x28] sm:$0xf]
    %v99 = vld [vmem:[%s4 + $0x2c] sm:$0xf]
    %v100 = vld [vmem:[%s4 + $0x30] sm:$0xf]
    %v101 = vld [vmem:[%s4 + $0x34] sm:$0xf]
    %v102 = vld [vmem:[%s4 + $0x38] sm:$0xf]
    %v103 = vld [vmem:[%s4 + $0x3c] sm:$0xf]
    %v104 = vld [vmem:[%s5] sm:$0x1]
    %v106 = vperm.slane %v104, 0
    %v124 = vunpack.c.l.b16 %v88
    %v125 = vunpack.c.l.b16 %v89
    %v126 = vunpack.c.l.b16 %v90
    %v127 = vunpack.c.l.b16 %v91
    %v128 = vunpack.c.l.b16 %v92
    %v129 = vunpack.c.l.b16 %v93
    %v130 = vunpack.c.l.b16 %v94
    %v131 = vunpack.c.l.b16 %v95
    %v132 = vunpack.c.l.b16 %v96
    %v133 = vunpack.c.l.b16 %v97
    %v134 = vunpack.c.l.b16 %v98
    %v135 = vunpack.c.l.b16 %v99
    %v136 = vunpack.c.l.b16 %v100
    %v137 = vunpack.c.l.b16 %v101
    %v138 = vunpack.c.l.b16 %v102
    %v139 = vunpack.c.l.b16 %v103
    %v140 = vpack.c.b16 %v125, %v124
    %v141 = vpack.c.b16 %v127, %v126
    %v142 = vpack.c.b16 %v129, %v128
    %v143 = vpack.c.b16 %v131, %v130
    %v144 = vpack.c.b16 %v133, %v132
    %v145 = vpack.c.b16 %v135, %v134
    %v146 = vpack.c.b16 %v137, %v136
    %v147 = vpack.c.b16 %v139, %v138
    %156 = vmatpush.bf16.msra.mxu0 %v147
    %157 = vmatpush.bf16.msra.mxu0 %v146
    %158 = vmatpush.bf16.msra.mxu0 %v145
    %159 = vmatpush.bf16.msra.mxu0 %v144
    %160 = vmatpush.bf16.msra.mxu0 %v143
    %161 = vmatpush.bf16.msra.mxu0 %v142
    %162 = vmatpush.bf16.msra.mxu0 %v141
    %163 = vmatpush.bf16.msra.mxu0 %v140
    %164 = vmatmul.bf16.gmra.mxu0 %v87
    %v165 = vpop.f32.mrf.mxu0
    %v166 = vadd.f32 %v106, %v165
    %v167 = vpop.f32.mrf.mxu0
    %168 = vdwg.mxu0
    %v169 = vmax.f32 %v166, 0.0
    %v170 = vpack.c.bf16 %v169, %v169
    %v171 = vld [vmem:[%s6] sm:$0xf]
    %v172 = vld [vmem:[%s6 + $0x4] sm:$0xf]
    %v173 = vld [vmem:[%s6 + $0x8] sm:$0xf]
    %v174 = vld [vmem:[%s6 + $0xc] sm:$0xf]
    %v175 = vld [vmem:[%s6 + $0x10] sm:$0xf]
    %v176 = vld [vmem:[%s6 + $0x14] sm:$0xf]
    %v177 = vld [vmem:[%s6 + $0x18] sm:$0xf]
    %v178 = vld [vmem:[%s6 + $0x1c] sm:$0xf]
    %v179 = vld [vmem:[%s7] sm:$0x1]
    %v181 = vperm.slane %v179, 0
    %v191 = vunpack.c.l.b16 %v171
    %v192 = vunpack.c.l.b16 %v172
    %v193 = vunpack.c.l.b16 %v173
    %v194 = vunpack.c.l.b16 %v174
    %v195 = vunpack.c.l.b16 %v175
    %v196 = vunpack.c.l.b16 %v176
    %v197 = vunpack.c.l.b16 %v177
    %v198 = vunpack.c.l.b16 %v178
    %v199 = vpack.c.b16 %v192, %v191
    %v200 = vpack.c.b16 %v194, %v193
    %v201 = vpack.c.b16 %v196, %v195
    %v202 = vpack.c.b16 %v198, %v197
    %vm207 = vcmask 523264
    %v209 = vsel %vm207, %v170, 0
    %211 = vmatpush.bf16.msra.mxu0 0
    %212 = vmatpush.bf16.msra.mxu0 0
    %213 = vmatpush.bf16.msra.mxu0 0
    %214 = vmatpush.bf16.msra.mxu0 0
    %215 = vmatpush.bf16.msra.mxu0 %v202
    %216 = vmatpush.bf16.msra.mxu0 %v201
    %217 = vmatpush.bf16.msra.mxu0 %v200
    %218 = vmatpush.bf16.msra.mxu0 %v199
    %219 = vmatmul.bf16.gmra.mxu0 %v209
    %v220 = vpop.f32.mrf.mxu0
    %v221 = vadd.f32 %v181, %v220
    %v222 = vpop.f32.mrf.mxu0
    %223 = vdwg.mxu0
    %v224 = vmax.f32 %v221, 0.0
    %v225 = vld [vmem:[%s8] sm:$0x1]
    %v226 = vld [vmem:[%s9] sm:$0x1]
    %v227 = vld [vmem:[%s1] sm:$0xf]
    %v228 = vunpack.c.l.bf16 %v227
    %vm229 = vcmask 72704
    %v231 = vsel %vm229, %v226, 0
    %v234 = vsel %vm229, %v228, 0
    %236 = vmatpush.xpose.msra.mxu0 0.0
    %237 = vmatpush.xpose.msra.mxu0 0.0
    %238 = vmatpush.xpose.msra.mxu0 0.0
    %239 = vmatpush.xpose.msra.mxu0 0.0
    %240 = vmatpush.xpose.msra.mxu0 0.0
    %241 = vmatpush.xpose.msra.mxu0 0.0
    %242 = vmatpush.xpose.msra.mxu0 0.0
    %243 = vmatpush.xpose.msra.mxu0 0.0
    %244 = vmatpush.xpose.msra.mxu0 0.0
    %245 = vmatpush.xpose.msra.mxu0 0.0
    %246 = vmatpush.xpose.msra.mxu0 0.0
    %247 = vmatpush.xpose.msra.mxu0 0.0
    %248 = vmatpush.xpose.msra.mxu0 0.0
    %249 = vmatpush.xpose.msra.mxu0 0.0
    %250 = vmatpush.xpose.msra.mxu0 0.0
    %251 = vmatpush.xpose.msra.mxu0 %v234
    %252 = vmatmul.f32.gmra.mxu0 %v231
    %v253 = vpop.f32.mrf.mxu0
    %v254 = vadd.f32 0.0, %v253
    %255 = vdwg.mxu0
    %vm256 = vcmask 261120
    %v258 = vsel %vm256, %v225, 0
    %v261 = vsel %vm256, %v224, 0
    %263 = vmatpush.xpose.msra.mxu0 0.0
    %264 = vmatpush.xpose.msra.mxu0 0.0
    %265 = vmatpush.xpose.msra.mxu0 0.0
    %266 = vmatpush.xpose.msra.mxu0 0.0
    %267 = vmatpush.xpose.msra.mxu0 0.0
    %268 = vmatpush.xpose.msra.mxu0 0.0
    %269 = vmatpush.xpose.msra.mxu0 0.0
    %270 = vmatpush.xpose.msra.mxu0 0.0
    %271 = vmatpush.xpose.msra.mxu0 0.0
    %272 = vmatpush.xpose.msra.mxu0 0.0
    %273 = vmatpush.xpose.msra.mxu0 0.0
    %274 = vmatpush.xpose.msra.mxu0 0.0
    %275 = vmatpush.xpose.msra.mxu0 0.0
    %276 = vmatpush.xpose.msra.mxu0 0.0
    %277 = vmatpush.xpose.msra.mxu0 0.0
    %278 = vmatpush.xpose.msra.mxu0 %v261
    %279 = vmatmul.f32.gmra.mxu0 %v258
    %v280 = vpop.f32.mrf.mxu0
    %v281 = vadd.f32 %v254, %v280
    %282 = vdwg.mxu0
    %v283 = vld [vmem:[#allocation2] sm:$0x1]
    %285 = vset.pattern.permute.xlu0 0
    %286 = vperm.xlu0 %285, %v283
    %v287 = vpop.permute.xlu0 %286
    %v289 = vperm.slane %v287, 0
    %v290 = vadd.f32 %v281, %v289
    %v291 = vxor.u32 %v290, 2147483648
    %v292 = vmul.f32 %v291, 1.442695
    %v293 = vpow.pop %v292
    %v294 = vadd.f32 %v293, 1.0
    %v295 = vrcp.pop %v294
    %v296 = vmul.f32 %v294, %v295
    %v297 = vsub.f32 1.0, %v296
    %v298 = vmul.f32 %v295, %v297
    %v299 = vadd.f32 %v295, %v298
    %vm300 = vweird.f32 %v294
    %vm301 = vweird.f32 %v295
    %vm302 = vmor %vm300, %vm301
    %v303 = vsel %vm302, %v295, %v299
    %v304 = vand.u32 2147483647, %v294
    %vm305 = vcmp.eq.f32.partialorder %v304, 8.507059e+37
    %v306 = vand.u32 %v294, 2147483648
    %v307 = vor.u32 1.1754944e-38, %v306
    %v308 = vsel %vm305, %v307, %v303
    %v309 = vmul.f32 1.0, %v308
    %vm310 = vcmask 57344
    %311 = vst.msk [vmem:[#allocation3] sm:$0x1] %vm310, %v309
    // Predicated region
    $region46: #{tpu_custom_call.1} parent=1 // pred_check
      _
    $region47: #{tpu_custom_call.1} parent=1 // pred_check_branch
      %313 = sbr.rel (0) target = $region49
    $region48: #{tpu_custom_call.1} parent=1 // pred_region
      %315 = vsyncadd [#allocation4], 0
      %s317 = sshll.u32 [#allocation3], 4
      %s318 = int_to_ptr.vmem [resolvable:$true] %s317
      %s319 = sshll.u32 %s11, 4
      %s320 = int_to_ptr.hbm [resolvable:$true] %s319
      %322 = dma.vmem_to_hbm [thread:$0]  %s318, 16, %s320, [#allocation4]
    $region49: #{tpu_custom_call.1} parent=1 // pred_fallthru
      _
    // Predicated region
    $region50: #{tpu_custom_call.1} parent=1 // pred_check
      _
    $region51: #{tpu_custom_call.1} parent=1 // pred_check_branch
      %324 = sbr.rel (0) target = $region53
    $region52: #{tpu_custom_call.1} parent=1 // pred_region
      %326 = dma.done [#allocation4], 16
    $region53: #{tpu_custom_call.1} parent=1 // pred_fallthru
      _
    %327 = vsyncpa [#allocation4], 1

</llo_original>
